<compile_context>
chip_gen: v7x
topology: tpu7x:2x2x1
jax: 0.10.0
libtpu: 0.0.40
codegen_flags: <defaults>
</compile_context>

<pallas_src>
import jax
import jax.numpy as jnp
from jax.experimental import pallas as pl
from jax.experimental.pallas import tpu as pltpu

EMBEDDING_SIZE = 50
_LANE = 128                         # vreg lane width (last dim)

_VMEM_PIPELINE_BUDGET = 24 * 1024 * 1024   # bytes of VMEM the pipeline buffers may use
_VMEM_LIMIT_BYTES = 32 * 1024 * 1024       # scoped-VMEM limit (safe on v5e/v6e/v7x)
_TILE_M_CAP = 512


def _round_up(x, m):
    return (x + m - 1) // m * m


def _sublane_multiple(itemsize):
    # vreg packing along sublanes: f32 -> 8 rows, bf16 -> 16, int8/fp8 -> 32
    return max(8, 32 // int(itemsize))


# ---------------------------------------------------------------------------
# Kernel: (tile_m, tk) @ (tk, 128) accumulated in an f32 VMEM scratch.
# ---------------------------------------------------------------------------
def _matmul_kernel(x_ref, w_ref, o_ref, acc_ref):
    k = pl.program_id(1)

    @pl.when(k == 0)
    def _():
        acc_ref[...] = jnp.zeros_like(acc_ref)

    a = x_ref[...]
    w = w_ref[...]
    if a.dtype != w.dtype:
        # In-kernel VPU cast: hides under the DMA/MXU instead of costing a
        # separate wrapper HBM pass over the dominant x stream.
        a = a.astype(w.dtype)

    acc_ref[...] += jnp.dot(a, w, preferred_element_type=jnp.float32)

    @pl.when(k == pl.num_programs(1) - 1)
    def _():
        o_ref[...] = acc_ref[...].astype(o_ref.dtype)


# ---------------------------------------------------------------------------
# Init-time weight preparation (hoisted out of the forward path).
# ---------------------------------------------------------------------------
def prepare_weight(weight, compute_dtype=jnp.float32):
    """PyTorch stores the Linear weight as (embedding_size, len_voc).

    Transpose to (len_voc, embedding_size) and zero-pad the embedding dim to a
    multiple of 128 lanes so the kernel's output block is lane-dense.
    """
    emb, len_voc = weight.shape
    emb_padded = _round_up(emb, _LANE)
    w_t = jnp.zeros((len_voc, emb_padded), dtype=compute_dtype)
    w_t = w_t.at[:, :emb].set(weight.T.astype(compute_dtype))
    return w_t  # (len_voc, emb_padded)


def _choose_tiles(batch, len_voc, emb_padded, x_itemsize, w_itemsize, out_itemsize):
    round_m = max(_sublane_multiple(x_itemsize), _sublane_multiple(w_itemsize))

    # At least 2 m-steps whenever the batch allows -> both v7x TensorCores work.
    tile_m = _round_up(max(1, pl.cdiv(batch, 2)), round_m)
    tile_m = min(_TILE_M_CAP, tile_m)

    # K tile: as large as the VMEM budget allows.
    #   double-buffered x block: 2 * tile_m * tk * x_bytes
    #   double-buffered W block: 2 * tk * emb_padded * w_bytes
    #   f32 accumulator        : tile_m * emb_padded * 4
    #   double-buffered output : 2 * tile_m * emb_padded * out_bytes
    fixed = tile_m * emb_padded * 4 + 2 * tile_m * emb_padded * out_itemsize
    per_k = 2 * tile_m * x_itemsize + 2 * emb_padded * w_itemsize
    tk_max = max(_LANE, (_VMEM_PIPELINE_BUDGET - fixed) // per_k)

    if len_voc <= tk_max:
        tk = len_voc                     # whole K in one block; weight stays resident
    else:
        tk = 0
        t = (min(tk_max, len_voc) // _LANE) * _LANE
        while t >= _LANE:                # largest lane-aligned tile that divides len_voc
            if len_voc % t == 0:
                tk = t
                break
            t -= _LANE
        if tk == 0:
            # TODO(synk): pad W's K at init + mask the x tail to K-tile vocab
            # sizes with no 128-aligned divisor; fall back to a single K block.
            tk = len_voc
    return tile_m, tk


# ---------------------------------------------------------------------------
# Forward pass: out = x @ W.T   (matches nn.Linear(len_voc, emb, bias=False))
# ---------------------------------------------------------------------------
def embedding_forward(x, w_t, emb=EMBEDDING_SIZE, *, out_dtype=None, trim_output=True):
    """x: (batch, len_voc); w_t: prepared weight (len_voc, emb_padded).

    Returns (batch, emb) in `out_dtype` (defaults to x.dtype).  Consumers that
    can read the lane-padded slab directly should pass trim_output=False to
    skip the final slice copy.
    """
    batch, len_voc = x.shape
    k_dim, emb_padded = w_t.shape
    assert k_dim == len_voc, "x feature dim must match weight len_voc"

    if out_dtype is None:
        out_dtype = x.dtype

    tile_m, tk = _choose_tiles(
        batch, len_voc, emb_padded,
        jnp.dtype(x.dtype).itemsize,
        jnp.dtype(w_t.dtype).itemsize,
        jnp.dtype(out_dtype).itemsize,
    )

    grid = (pl.cdiv(batch, tile_m), pl.cdiv(len_voc, tk))

    out = pl.pallas_call(
        _matmul_kernel,
        out_shape=jax.ShapeDtypeStruct((batch, emb_padded), out_dtype),
        grid_spec=pltpu.PrefetchScalarGridSpec(
            num_scalar_prefetch=0,
            grid=grid,
            in_specs=[
                # Activations: one (tile_m, tk) block per (m, k) step.
                pl.BlockSpec((tile_m, tk), lambda m, k: (m, k)),
                # Weight: indexed only by k; resident when grid_k == 1, small
                # double-buffered (tk, 128) blocks otherwise.
                pl.BlockSpec((tk, emb_padded), lambda m, k: (k, 0)),
            ],
            # Lane-dense (128-wide) output block -> unmasked stores; written
            # only on the last k step from the f32 accumulator.
            out_specs=pl.BlockSpec((tile_m, emb_padded), lambda m, k: (m, 0)),
            scratch_shapes=[pltpu.VMEM((tile_m, emb_padded), jnp.float32)],
        ),
        compiler_params=pltpu.CompilerParams(
            dimension_semantics=("parallel", "arbitrary"),
            vmem_limit_bytes=_VMEM_LIMIT_BYTES,
        ),
    )(x, w_t)

    if trim_output:
        out = out[:, :emb]
    return out


if __name__ == "__main__":
    key = jax.random.PRNGKey(0)
    k_w, k_x = jax.random.split(key)

    len_voc = 64
    batch = 16

    # Deterministic init mimicking nn.Linear default: U(-1/sqrt(fan_in), 1/sqrt(fan_in))
    bound = 1.0 / (len_voc ** 0.5)
    weight = jax.random.uniform(
        k_w, (EMBEDDING_SIZE, len_voc), minval=-bound, maxval=bound,
        dtype=jnp.float32,
    )
    x = jax.random.normal(k_x, (batch, len_voc), dtype=jnp.float32)

    ref = x @ weight.T  # pure-JAX reference

    # ---- f32 weights, f32 activations (exact) ----
    w_f32 = prepare_weight(weight, jnp.float32)            # init-time, not per call
    out = jax.block_until_ready(embedding_forward(x, w_f32))
    assert out.shape == (batch, EMBEDDING_SIZE)
    assert jnp.allclose(out, ref, atol=1e-5, rtol=1e-5)

    # ---- bf16 weights, f32 activations: in-kernel cast (no wrapper astype pass) ----
    w_bf16 = prepare_weight(weight, jnp.bfloat16)          # init-time, not per call
    out_mixed = jax.block_until_ready(embedding_forward(x, w_bf16))
    assert out_mixed.shape == (batch, EMBEDDING_SIZE)
    assert out_mixed.dtype == jnp.float32
    assert jnp.allclose(out_mixed, ref, atol=5e-2, rtol=5e-2)

    # ---- fully bf16 path (activations already stored in bf16 upstream) ----
    out_bf16 = jax.block_until_ready(
        embedding_forward(x.astype(jnp.bfloat16), w_bf16)
    )
    assert out_bf16.shape == (batch, EMBEDDING_SIZE)
    assert out_bf16.dtype == jnp.bfloat16
    assert jnp.allclose(out_bf16.astype(jnp.float32), ref, atol=5e-2, rtol=5e-2)

    # ---- ragged batch (not a tile multiple): masked edge blocks, no jnp.pad ----
    x_ragged = x[:13]
    out_r = jax.block_until_ready(embedding_forward(x_ragged, w_f32))
    assert out_r.shape == (13, EMBEDDING_SIZE)
    assert jnp.allclose(out_r, ref[:13], atol=1e-5, rtol=1e-5)

    print("KERNEL_OK")
</pallas_src>

<mosaic_0001>
module attributes {stable_mosaic.version = 11 : i64} {
  func.func @_matmul_kernel(%arg0: i32, %arg1: i32, %arg2: memref<8x64xf32, #tpu.memory_space<vmem>>, %arg3: memref<64x128xf32, #tpu.memory_space<vmem>>, %arg4: memref<8x128xf32, #tpu.memory_space<vmem>>, %arg5: memref<8x128xf32, #tpu.memory_space<vmem>>) attributes {dimension_semantics = [#tpu.dimension_semantics<parallel>, #tpu.dimension_semantics<arbitrary>], iteration_bounds = array<i64: 2, 1>, scalar_prefetch = 0 : i64, scratch_operands = 1 : i64, tpu.core_type = #tpu.core_type<tc>, window_params = [{transform_indices = @transform_0, window_bounds = array<i64: 8, 64>}, {transform_indices = @transform_1, window_bounds = array<i64: 64, 128>}, {transform_indices = @transform_2, window_bounds = array<i64: 8, 128>}]} {
    %c0_i32 = arith.constant 0 : i32
    %0 = arith.cmpi eq, %arg1, %c0_i32 : i32
    %1 = arith.extui %0 : i1 to i32
    %c0_i32_0 = arith.constant 0 : i32
    %2 = arith.cmpi ne, %1, %c0_i32_0 : i32
    scf.if %2 {
      %cst_10 = arith.constant 0.000000e+00 : f32
      %12 = vector.broadcast %cst_10 : f32 to vector<8x128xf32>
      %c0_11 = arith.constant 0 : index
      %c0_12 = arith.constant 0 : index
      %13 = vector.load %arg5[%c0_11, %c0_12] : memref<8x128xf32, #tpu.memory_space<vmem>>, vector<8x128xf32>
      tpu.vector_store %arg5[%c0_11, %c0_12], %12 {strides = array<i32>} : memref<8x128xf32, #tpu.memory_space<vmem>>, vector<8x128xf32>,
    } else {
    }
    %c0 = arith.constant 0 : index
    %c0_1 = arith.constant 0 : index
    %3 = vector.load %arg2[%c0, %c0_1] : memref<8x64xf32, #tpu.memory_space<vmem>>, vector<8x64xf32>
    %c0_2 = arith.constant 0 : index
    %c0_3 = arith.constant 0 : index
    %4 = vector.load %arg3[%c0_2, %c0_3] : memref<64x128xf32, #tpu.memory_space<vmem>>, vector<64x128xf32>
    %c0_4 = arith.constant 0 : index
    %c0_5 = arith.constant 0 : index
    %5 = vector.load %arg5[%c0_4, %c0_5] : memref<8x128xf32, #tpu.memory_space<vmem>>, vector<8x128xf32>
    %cst = arith.constant dense<0.000000e+00> : vector<8x128xf32>
    %6 = tpu.matmul %3, %4, %cst {dimension_numbers = #tpu.dot_dimension_numbers<[1], [0], [0], [1], [0, 0, 1, 1], [], []>} : vector<8x64xf32>, vector<64x128xf32>, vector<8x128xf32> -> vector<8x128xf32>
    %7 = arith.addf %5, %6 : vector<8x128xf32>
    %c0_6 = arith.constant 0 : index
    %c0_7 = arith.constant 0 : index
    %8 = vector.load %arg5[%c0_6, %c0_7] : memref<8x128xf32, #tpu.memory_space<vmem>>, vector<8x128xf32>
    tpu.vector_store %arg5[%c0_6, %c0_7], %7 {strides = array<i32>} : memref<8x128xf32, #tpu.memory_space<vmem>>, vector<8x128xf32>,
    %c0_i32_8 = arith.constant 0 : i32
    %9 = arith.cmpi eq, %arg1, %c0_i32_8 : i32
    %10 = arith.extui %9 : i1 to i32
    %c0_i32_9 = arith.constant 0 : i32
    %11 = arith.cmpi ne, %10, %c0_i32_9 : i32
    scf.if %11 {
      %c0_10 = arith.constant 0 : index
      %c0_11 = arith.constant 0 : index
      %12 = vector.load %arg5[%c0_10, %c0_11] : memref<8x128xf32, #tpu.memory_space<vmem>>, vector<8x128xf32>
      %c0_12 = arith.constant 0 : index
      %c0_13 = arith.constant 0 : index
      %13 = vector.load %arg4[%c0_12, %c0_13] : memref<8x128xf32, #tpu.memory_space<vmem>>, vector<8x128xf32>
      tpu.vector_store %arg4[%c0_12, %c0_13], %12 {strides = array<i32>} : memref<8x128xf32, #tpu.memory_space<vmem>>, vector<8x128xf32>,
    } else {
    }
    return
  }
  func.func @transform_0(%arg0: i32, %arg1: i32) -> (i32, i32) {
    %c0_i32 = arith.constant 0 : i32
    return %arg0, %arg1 : i32, i32
  }
  func.func @transform_1(%arg0: i32, %arg1: i32) -> (i32, i32) {
    %c0_i32 = arith.constant 0 : i32
    %c0_i32_0 = arith.constant 0 : i32
    return %arg1, %c0_i32 : i32, i32
  }
  func.func @transform_2(%arg0: i32, %arg1: i32) -> (i32, i32) {
    %c0_i32 = arith.constant 0 : i32
    %c0_i32_0 = arith.constant 0 : i32
    return %arg0, %c0_i32 : i32, i32
  }
}

</mosaic_0001>

<llo_original>
// kernel: tpu_custom_call.1
$region0: #{tpu_custom_call.1}
  #allocation0 [shape = 'u32[]', space=smem, size = 0x4, offset = 0x4, fixed_abs, tag = 'smem constant byte address 0x4 - core index']
  #allocation1 [shape = 'u32[144,128]{1,0:T(1,128)}', space=vmem, size = 0x12000, scoped, tag = 'internal scratch']
  #allocation2 [shape = 'f32[8,128]{1,0:T(8,128)}', space=vmem, size = 0x1000, scoped, tag = 'scratch operand']
  %s0 = inlined_call_operand.hbm [shape: f32[16,64], index: 0, kind: input, shape index: {}]
  %s1 = inlined_call_operand.hbm [shape: f32[64,128], index: 1, kind: input, shape index: {}]
  %s2 = inlined_call_operand.hbm [shape: f32[16,128], index: 2, kind: output, shape index: {}]
  %s3 = sld [smem:[#allocation0]]
  $region57: #{tpu_custom_call.1} parent=0
    _
  %s5 = ssub.s32 1, %s3
  %s6 = scalar_select 0, %s5, %s3
  $region1: #{tpu_custom_call.1} parent=0
    #allocation3 [shape = 'u8[8192]{0}', space=vmem, size = 0x2000, scoped, tag = 'input window, operand 0']
    #allocation4 [shape = 's32[2]{0}', space=sflag, size = 0x8, scoped, tag = 'scoped memory for tpu_custom_call.1']
    #allocation5 [shape = 's32[2]{0}', space=sflag, size = 0x8, scoped, tag = 'scoped memory for tpu_custom_call.1']
    #allocation6 [shape = 'u8[32768]{0}', space=vmem, size = 0x8000, scoped, tag = 'input window, operand 1, single buffered']
    #allocation7 [shape = 's32[1]{0}', space=sflag, size = 0x4, scoped, tag = 'scoped memory for tpu_custom_call.1']
    #allocation8 [shape = 'u8[8192]{0}', space=vmem, size = 0x2000, scoped, tag = 'output window, operand 0']
    %7 = vsyncpa [#allocation4], 0
    %s8 = scalar_lea.sflag [#allocation4], 1
    %9 = vsyncpa %s8, 0
    %10 = vsyncpa [#allocation7], 0
    %11 = vsyncpa [#allocation5], 0
    %s12 = scalar_lea.sflag [#allocation5], 1
    %13 = vsyncpa %s12, 0
    loop: start=0, step=1, limit=4
    $region2: #{tpu_custom_call.1} parent=1 // loop_pre_header
      _
    $region3: #{tpu_custom_call.1} parent=1 // loop_header
      %s15 = sphi 0, %s19
      %p16 = scmp.ge.s32.totalorder %s15, 4
      %s22 = sphi 0, %s34
      %s23 = sphi 0, %s30
      %s24 = sphi 0, %s22
      %s25 = sphi 0, %s23
      %s26 = sphi 0, %s24
      %s27 = sphi 0, %s25
      %s39 = sphi 0, %s41
      %s42 = sphi 0, %s39
      %s43 = sphi 0, %s42
      %s59 = sphi 0, %s43
      %s65 = sphi 0, %s67
      %s68 = sphi 0, %s65
      %s69 = sphi 0, %s68
      %s85 = sphi 0, %s69
      %s91 = sphi 0, %s93
      %s94 = sphi 0, %s91
      %s95 = sphi 0, %s94
      %s111 = sphi 0, %s95
    $region4: #{tpu_custom_call.1} parent=1 // loop_header_branch
      %18 = sbr.rel (%p16) target = $region8
    $region5: #{tpu_custom_call.1} parent=1 // loop_body
      %s20 = ssub.s32 %s15, 1
      %s21 = ssub.s32 %s15, 2
      %s28 = sadd.s32 1, %s23
      %p29 = scmp.ge.s32.totalorder %s28, 1
      %s30 = scalar_select %p29, 0, %s28
      %s31 = sadd.s32 1, %s22
      %s32 = scalar_select %p29, %s31, %s22
      %p33 = scmp.ge.s32.totalorder %s32, 2
      %s34 = scalar_select %p33, 0, %s32
      %s35 = ssub.s32 %s22, %s34
      %s36 = ssub.s32 %s23, %s30
      %s37 = sor.u32 %s35, %s36
      %p38 = scmp.eq.s32.totalorder %s37, 0
      %s40 = sadd.s32 %s39, 1
      %s41 = scalar_select %p38, %s39, %s40
      %p44 = pneg %p38
      %p45 = scmp.eq.s32.totalorder %s15, 1
      %p46 = por %p44, %p45
      %p47 = scmp.ne.s32.totalorder %s39, %s42
      %p48 = scmp.eq.s32.totalorder %s15, 0
      %p49 = por %p47, %p48
      %p50 = scmp.ne.s32.totalorder %s39, %s42
      %p51 = scmp.eq.s32.totalorder %s20, 1
      %p52 = por %p50, %p51
      %p53 = scmp.ne.s32.totalorder %s42, %s43
      %p54 = scmp.eq.s32.totalorder %s20, 0
      %p55 = por %p53, %p54
      %p56 = scmp.ne.s32.totalorder %s42, %s43
      %p57 = scmp.eq.s32.totalorder %s21, 1
      %p58 = por %p56, %p57
      %p60 = scmp.ne.s32.totalorder %s43, %s59
      %p61 = scmp.eq.s32.totalorder %s21, 0
      %p62 = por %p60, %p61
      %s63 = ssub.s32 %s23, %s30
      %p64 = scmp.eq.s32.totalorder %s63, 0
      %s66 = sadd.s32 %s65, 1
      %s67 = scalar_select %p64, %s65, %s66
      %p70 = pneg %p64
      %p71 = scmp.eq.s32.totalorder %s15, 1
      %p72 = por %p70, %p71
      %p73 = scmp.ne.s32.totalorder %s65, %s68
      %p74 = scmp.eq.s32.totalorder %s15, 0
      %p75 = por %p73, %p74
      %p76 = scmp.ne.s32.totalorder %s65, %s68
      %p77 = scmp.eq.s32.totalorder %s20, 1
      %p78 = por %p76, %p77
      %p79 = scmp.ne.s32.totalorder %s68, %s69
      %p80 = scmp.eq.s32.totalorder %s20, 0
      %p81 = por %p79, %p80
      %p82 = scmp.ne.s32.totalorder %s68, %s69
      %p83 = scmp.eq.s32.totalorder %s21, 1
      %p84 = por %p82, %p83
      %p86 = scmp.ne.s32.totalorder %s69, %s85
      %p87 = scmp.eq.s32.totalorder %s21, 0
      %p88 = por %p86, %p87
      %s89 = ssub.s32 %s22, %s34
      %p90 = scmp.eq.s32.totalorder %s89, 0
      %s92 = sadd.s32 %s91, 1
      %s93 = scalar_select %p90, %s91, %s92
      %p96 = pneg %p90
      %p97 = scmp.eq.s32.totalorder %s15, 1
      %p98 = por %p96, %p97
      %p99 = scmp.ne.s32.totalorder %s91, %s94
      %p100 = scmp.eq.s32.totalorder %s15, 0
      %p101 = por %p99, %p100
      %p102 = scmp.ne.s32.totalorder %s91, %s94
      %p103 = scmp.eq.s32.totalorder %s20, 1
      %p104 = por %p102, %p103
      %p105 = scmp.ne.s32.totalorder %s94, %s95
      %p106 = scmp.eq.s32.totalorder %s20, 0
      %p107 = por %p105, %p106
      %p108 = scmp.ne.s32.totalorder %s94, %s95
      %p109 = scmp.eq.s32.totalorder %s21, 1
      %p110 = por %p108, %p109
      %p112 = scmp.ne.s32.totalorder %s95, %s111
      %p113 = scmp.eq.s32.totalorder %s21, 0
      %p114 = por %p112, %p113
      %p115 = scmp.le.s32.totalorder 1, %s15
      %p116 = scmp.lt.s32.totalorder %s15, 3
      %p117 = pnand %p115, %p116
      %p118 = pneg %p117
      // Predicated region
      $region9: #{tpu_custom_call.1} parent=5 // pred_check
        _
      $region10: #{tpu_custom_call.1} parent=5 // pred_check_branch
        %120 = sbr.rel (%p117) target = $region12
      $region11: #{tpu_custom_call.1} parent=5 // pred_region
        %s121 = ssub.s32 %s15, 1
        // Predicated region
        $region13: #{tpu_custom_call.1} parent=11 // pred_check
          %p122 = pneg %p81
        $region14: #{tpu_custom_call.1} parent=11 // pred_check_branch
          %124 = sbr.rel (%p122) target = $region16
        $region15: #{tpu_custom_call.1} parent=11 // pred_region
          %s125 = smul.u32 8, %s25
          %s127 = ssub.s32 1024, 1024
          %128 = vsyncadd [#allocation7], %s127
          %s129 = smul.addr %s125, 128
          %s130 = scalar_lea.hbm %s1, %s129
          %s131 = sshll.u32 [#allocation6], 4
          %s132 = int_to_ptr.vmem [resolvable:$true] %s131
          %137 = dma.hbm_to_vmem [thread:$0]  %s130, 1024, %s132, [#allocation7], 128, 128, 8
        $region16: #{tpu_custom_call.1} parent=11 // pred_fallthru
          _
      $region12: #{tpu_custom_call.1} parent=5 // pred_fallthru
        _
      %p138 = scmp.lt.s32.totalorder %s15, 2
      // Predicated region
      $region17: #{tpu_custom_call.1} parent=5 // pred_check
        %p139 = pneg %p138
      $region18: #{tpu_custom_call.1} parent=5 // pred_check_branch
        %141 = sbr.rel (%p139) target = $region20
      $region19: #{tpu_custom_call.1} parent=5 // pred_region
        // Predicated region
        $region21: #{tpu_custom_call.1} parent=19 // pred_check
          %p142 = pneg %p49
        $region22: #{tpu_custom_call.1} parent=19 // pred_check_branch
          %144 = sbr.rel (%p142) target = $region24
        $region23: #{tpu_custom_call.1} parent=19 // pred_region
          %s145 = sand.u32 %s39, 1
          %s146 = scalar_lea.sflag [#allocation4], %s145
          %s147 = sand.u32 %s39, 1
          %s148 = smul.addr %s147, 8
          %s149 = scalar_lea.vmem [#allocation3], %s148
          %s151 = ssub.s32 128, 128
          %152 = vsyncadd %s146, %s151
          %s153 = sadd.s32 %s23, %s22
          %s154 = smul.addr %s153, 128
          %s155 = scalar_lea.hbm %s0, %s154
          %s157 = sshll.u32 %s149, 4
          %s158 = int_to_ptr.vmem [resolvable:$true] %s157
          %160 = dma.hbm_to_vmem [thread:$0]  %s155, 128, %s158, %s146
        $region24: #{tpu_custom_call.1} parent=19 // pred_fallthru
          _
      $region20: #{tpu_custom_call.1} parent=5 // pred_fallthru
        _
      %p161 = scmp.le.s32.totalorder 1, %s15
      %p162 = scmp.lt.s32.totalorder %s15, 3
      %p163 = pnand %p161, %p162
      %p164 = pneg %p163
      // Predicated region
      $region25: #{tpu_custom_call.1} parent=5 // pred_check
        _
      $region26: #{tpu_custom_call.1} parent=5 // pred_check_branch
        %166 = sbr.rel (%p163) target = $region28
      $region27: #{tpu_custom_call.1} parent=5 // pred_region
        %s167 = ssub.s32 %s15, 1
        %s168 = sand.u32 %s42, 1
        %s169 = scalar_lea.sflag [#allocation4], %s168
        %s170 = sand.u32 %s42, 1
        %s171 = smul.addr %s170, 8
        %s172 = scalar_lea.vmem [#allocation3], %s171
        // Predicated region
        $region29: #{tpu_custom_call.1} parent=27 // pred_check
          %p173 = pneg %p55
        $region30: #{tpu_custom_call.1} parent=27 // pred_check_branch
          %175 = sbr.rel (%p173) target = $region32
        $region31: #{tpu_custom_call.1} parent=27 // pred_region
          %176 = dma.done %s169, 128
        $region32: #{tpu_custom_call.1} parent=27 // pred_fallthru
          _
        // Predicated region
        $region33: #{tpu_custom_call.1} parent=27 // pred_check
          %p177 = pneg %p81
        $region34: #{tpu_custom_call.1} parent=27 // pred_check_branch
          %179 = sbr.rel (%p177) target = $region36
        $region35: #{tpu_custom_call.1} parent=27 // pred_region
          %180 = dma.done [#allocation7], 1024
        $region36: #{tpu_custom_call.1} parent=27 // pred_fallthru
          _
        %s181 = sand.u32 %s42, 1
        %s182 = scalar_lea.sflag [#allocation4], %s181
        %s183 = sand.u32 %s42, 1
        %s184 = smul.addr %s183, 8
        %s185 = scalar_lea.vmem [#allocation3], %s184
        %p186 = pneg %p55
        %p187 = pneg %p52
        %p188 = pneg %p81
        %p189 = pneg %p78
        %p190 = pneg %p107
        %p191 = pneg %p104
        %s192 = sand.u32 %s94, 1
        %s193 = scalar_lea.sflag [#allocation5], %s192
        %s194 = sand.u32 %s94, 1
        %s195 = smul.addr %s194, 8
        %s196 = scalar_lea.vmem [#allocation8], %s195
        %s197 = smul.u32 8, %s25
        %p198 = scmp.eq.s32.totalorder %s25, 0
        // Predicated region
        $region37: #{tpu_custom_call.1} parent=27 // pred_check
          %p199 = pneg %p198
        $region38: #{tpu_custom_call.1} parent=27 // pred_check_branch
          %201 = sbr.rel (%p199) target = $region40
        $region39: #{tpu_custom_call.1} parent=27 // pred_region
          %202 = vst [vmem:[#allocation2] sm:$0xff] 0.0
        $region40: #{tpu_custom_call.1} parent=27 // pred_fallthru
          _
        %v203 = vld [vmem:[%s172] sm:$0xff]
        %v204 = vld [vmem:[#allocation6] sm:$0xff]
        %v205 = vld [vmem:[#allocation6 + $0x8] sm:$0xff]
        %v206 = vld [vmem:[#allocation6 + $0x10] sm:$0xff]
        %v207 = vld [vmem:[#allocation6 + $0x18] sm:$0xff]
        %v208 = vld [vmem:[#allocation6 + $0x20] sm:$0xff]
        %v209 = vld [vmem:[#allocation6 + $0x28] sm:$0xff]
        %v210 = vld [vmem:[#allocation6 + $0x30] sm:$0xff]
        %v211 = vld [vmem:[#allocation6 + $0x38] sm:$0xff]
        %v212 = vld [vmem:[#allocation2] sm:$0xff]
        %vm213 = vcmask 523264
        %v215 = vsel %vm213, %v203, 0
        %217 = vmatprep.subr.mxu0 0.0
        %218 = vmatpush1.msra.mxu0 %v204
        %219 = vmatprep.subr.mxu0 0.0
        %220 = vmatpush1.msra.mxu0 %v205
        %221 = vmatprep.subr.mxu0 0.0
        %222 = vmatpush1.msra.mxu0 %v206
        %223 = vmatprep.subr.mxu0 0.0
        %224 = vmatpush1.msra.mxu0 %v207
        %225 = vmatprep.subr.mxu0 0.0
        %226 = vmatpush1.msra.mxu0 %v208
        %227 = vmatprep.subr.mxu0 0.0
        %228 = vmatpush1.msra.mxu0 %v209
        %229 = vmatprep.subr.mxu0 0.0
        %230 = vmatpush1.msra.mxu0 %v210
        %231 = vmatprep.subr.mxu0 0.0
        %232 = vmatpush1.msra.mxu0 %v211
        %233 = vmatprep.subr.mxu0 0.0
        %234 = vmatpush1.msra.mxu0 0.0
        %235 = vmatprep.subr.mxu0 0.0
        %236 = vmatpush1.msra.mxu0 0.0
        %237 = vmatprep.subr.mxu0 0.0
        %238 = vmatpush1.msra.mxu0 0.0
        %239 = vmatprep.subr.mxu0 0.0
        %240 = vmatpush1.msra.mxu0 0.0
        %241 = vmatprep.subr.mxu0 0.0
        %242 = vmatpush1.msra.mxu0 0.0
        %243 = vmatprep.subr.mxu0 0.0
        %244 = vmatpush1.msra.mxu0 0.0
        %245 = vmatprep.subr.mxu0 0.0
        %246 = vmatpush1.msra.mxu0 0.0
        %247 = vmatprep.subr.mxu0 0.0
        %248 = vmatpush1.msra.mxu0 0.0
        %249 = vmatprep.subr.mxu0 0.0
        %250 = vmatpush1.msra.mxu0 0.0
        %251 = vmatprep.subr.mxu0 0.0
        %252 = vmatpush1.msra.mxu0 0.0
        %253 = vmatprep.subr.mxu0 0.0
        %254 = vmatpush1.msra.mxu0 0.0
        %255 = vmatprep.subr.mxu0 0.0
        %256 = vmatpush1.msra.mxu0 0.0
        %257 = vmatprep.subr.mxu0 0.0
        %258 = vmatpush1.msra.mxu0 0.0
        %259 = vmatprep.subr.mxu0 0.0
        %260 = vmatpush1.msra.mxu0 0.0
        %261 = vmatprep.subr.mxu0 0.0
        %262 = vmatpush1.msra.mxu0 0.0
        %263 = vmatprep.subr.mxu0 0.0
        %264 = vmatpush1.msra.mxu0 0.0
        %265 = vmatprep.subr.mxu0 0.0
        %266 = vmatpush1.msra.mxu0 0.0
        %267 = vmatprep.subr.mxu0 0.0
        %268 = vmatpush1.msra.mxu0 0.0
        %269 = vmatprep.subr.mxu0 0.0
        %270 = vmatpush1.msra.mxu0 0.0
        %271 = vmatprep.subr.mxu0 0.0
        %272 = vmatpush1.msra.mxu0 0.0
        %273 = vmatprep.subr.mxu0 0.0
        %274 = vmatpush1.msra.mxu0 0.0
        %275 = vmatprep.subr.mxu0 0.0
        %276 = vmatpush1.msra.mxu0 0.0
        %277 = vmatprep.subr.mxu0 0.0
        %278 = vmatpush1.msra.mxu0 0.0
        %279 = vmatprep.subr.mxu0 0.0
        %280 = vmatpush1.msra.mxu0 0.0
        %281 = vmatprep.mubr.f32.mxu0 0.0
        %282 = vmatmul.mubr.f32.gmra.mrb[0].mxu0 %v215
        %v283 = vpop.f32.mrb[0].mxu0
        %v284 = vadd.f32 0.0, %v283
        %v285 = vpop.f32.mrb[0].mxu0
        %286 = vdwg.mxu0
        %v287 = vadd.f32 %v212, %v284
        %288 = vst [vmem:[#allocation2] sm:$0xff] %v287
        // Predicated region
        $region41: #{tpu_custom_call.1} parent=27 // pred_check
          %p289 = pneg %p198
        $region42: #{tpu_custom_call.1} parent=27 // pred_check_branch
          %291 = sbr.rel (%p289) target = $region44
        $region43: #{tpu_custom_call.1} parent=27 // pred_region
          %v292 = vld [vmem:[#allocation2] sm:$0xff]
          %293 = vst [vmem:[%s196] sm:$0xff] %v292
        $region44: #{tpu_custom_call.1} parent=27 // pred_fallthru
          _
        %s294 = sand.u32 %s94, 1
        %s295 = scalar_lea.sflag [#allocation5], %s294
        %s296 = sand.u32 %s94, 1
        %s297 = smul.addr %s296, 8
        %s298 = scalar_lea.vmem [#allocation8], %s297
        // Predicated region
        $region45: #{tpu_custom_call.1} parent=27 // pred_check
          %p299 = pneg %p104
        $region46: #{tpu_custom_call.1} parent=27 // pred_check_branch
          %301 = sbr.rel (%p299) target = $region48
        $region47: #{tpu_custom_call.1} parent=27 // pred_region
          %s303 = ssub.s32 128, 128
          %304 = vsyncadd %s295, %s303
          %s305 = smul.addr %s24, 128
          %s306 = scalar_lea.hbm %s2, %s305
          %s308 = sshll.u32 %s298, 4
          %s309 = int_to_ptr.vmem [resolvable:$true] %s308
          %311 = dma.vmem_to_hbm [thread:$0]  %s309, 128, %s306, %s295
        $region48: #{tpu_custom_call.1} parent=27 // pred_fallthru
          _
      $region28: #{tpu_custom_call.1} parent=5 // pred_fallthru
        _
      %p312 = scmp.le.s32.totalorder 2, %s15
      // Predicated region
      $region49: #{tpu_custom_call.1} parent=5 // pred_check
        %p313 = pneg %p312
      $region50: #{tpu_custom_call.1} parent=5 // pred_check_branch
        %315 = sbr.rel (%p313) target = $region52
      $region51: #{tpu_custom_call.1} parent=5 // pred_region
        %s316 = ssub.s32 %s15, 2
        // Predicated region
        $region53: #{tpu_custom_call.1} parent=51 // pred_check
          %p317 = pneg %p110
        $region54: #{tpu_custom_call.1} parent=51 // pred_check_branch
          %319 = sbr.rel (%p317) target = $region56
        $region55: #{tpu_custom_call.1} parent=51 // pred_region
          %s320 = sand.u32 %s95, 1
          %s321 = scalar_lea.sflag [#allocation5], %s320
          %s322 = sand.u32 %s95, 1
          %s323 = smul.addr %s322, 8
          %s324 = scalar_lea.vmem [#allocation8], %s323
          %325 = dma.done %s321, 128
        $region56: #{tpu_custom_call.1} parent=51 // pred_fallthru
          _
      $region52: #{tpu_custom_call.1} parent=5 // pred_fallthru
        _
    $region6: #{tpu_custom_call.1} parent=1 // loop_footer
      %s19 = sadd.s32 1, %s15
    $region7: #{tpu_custom_call.1} parent=1 // loop_footer_branch
      %14 = sbr.rel target = $region3
    $region8: #{tpu_custom_call.1} parent=1 // loop_exit
      _
    %326 = vsyncpa [#allocation4], 1
    %s327 = scalar_lea.sflag [#allocation4], 1
    %328 = vsyncpa %s327, 1
    %329 = vsyncpa [#allocation7], 1
    %330 = vsyncpa [#allocation5], 1
    %s331 = scalar_lea.sflag [#allocation5], 1
    %332 = vsyncpa %s331, 1

</llo_original>
